<compile_context>
chip_gen: v6e
topology: v6e:2x2x1
jax: 0.10.0
libtpu: 0.0.40
codegen_flags: <defaults>
</compile_context>

<pallas_src>
import jax
import jax.numpy as jnp
from jax.experimental import pallas as pl
from jax.experimental.pallas import tpu as pltpu


def _round_up(v, m):
    return (v + m - 1) // m * m


def _vmem_capacity_bytes():
    """Best-effort per-core VMEM capacity; conservative 64 MiB fallback."""
    try:
        info = pltpu.get_tpu_info()
        cap = int(getattr(info, "vmem_capacity_bytes", 0))
        if cap > 0:
            return cap
    except Exception:
        pass
    return 64 << 20


def _hermite_kan_kernel(degree, input_dim):
    """Kernel closed over the (static) polynomial degree / input_dim."""
    dp1 = degree + 1

    def kernel(x_ref, c_ref, o_ref, h_scr):
        # x_ref: (TB, I) input dtype ; c_ref: (K, TN) bf16 ;
        # o_ref: (TB, TN) out dtype  ; h_scr: (TB, K) bf16 persistent scratch.
        #
        # The Hermite expansion only depends on the batch tile, so compute it
        # once per batch tile (j == 0) and reuse it across all output-column
        # programs via the VMEM scratch.
        @pl.when(pl.program_id(1) == 0)
        def _():
            t = jnp.tanh(x_ref[...].astype(jnp.float32))
            two_t = 2.0 * t
            # Keep only two f32 recurrence carries live; stash bf16 chunks.
            h_prev = jnp.ones_like(t)                      # H_0
            chunks = [h_prev.astype(jnp.bfloat16)]
            if degree > 0:
                h_cur = two_t                              # H_1
                chunks.append(h_cur.astype(jnp.bfloat16))
                for d in range(2, dp1):
                    h_prev, h_cur = h_cur, two_t * h_cur - (2.0 * (d - 1)) * h_prev
                    chunks.append(h_cur.astype(jnp.bfloat16))
            # d-major layout: column d * input_dim + i (matches coeff prep).
            h_scr[...] = jnp.concatenate(chunks, axis=-1)

        # Single MXU matmul, bf16 inputs, f32 accumulate.
        o_ref[...] = jnp.dot(h_scr[...], c_ref[...],
                             preferred_element_type=jnp.float32
                             ).astype(o_ref.dtype)

    return kernel


def prepare_hermite_coeffs(hermite_coeffs):
    """Host-side coefficient prep: (I, O, D+1) -> (K, o_pad) bf16, d-major.

    Call once per parameter update and pass the result via `prepared_coeffs`
    to keep the transpose/pad/cast out of the per-step inner loop.
    """
    input_dim, output_dim, dp1 = hermite_coeffs.shape
    K = dp1 * input_dim
    o_pad = _round_up(output_dim, 128)
    c2 = jnp.transpose(hermite_coeffs, (2, 0, 1)).reshape(K, output_dim)
    if o_pad != output_dim:
        c2 = jnp.pad(c2, ((0, 0), (0, o_pad - output_dim)))
    return c2.astype(jnp.bfloat16)


def hermite_kan_forward(x, hermite_coeffs, *, block_b=1024, prepared_coeffs=None):
    """Pallas implementation of HermiteKANLayer.forward.

    Args:
      x: any-shape array whose size is divisible by input_dim.
      hermite_coeffs: (input_dim, output_dim, degree + 1) parameter.
      prepared_coeffs: optional output of prepare_hermite_coeffs (hoisted prep).
    Returns:
      (B, output_dim) array (x's floating dtype), B = x.size // input_dim.
    """
    input_dim, output_dim, dp1 = hermite_coeffs.shape
    degree = dp1 - 1
    K = dp1 * input_dim
    o_pad = _round_up(output_dim, 128)

    c2 = (prepare_hermite_coeffs(hermite_coeffs)
          if prepared_coeffs is None else prepared_coeffs)

    x2 = jnp.reshape(x, (-1, input_dim))
    B = x2.shape[0]
    out_dtype = x2.dtype if jnp.issubdtype(x2.dtype, jnp.floating) else jnp.float32
    x_itemsize = jnp.dtype(x2.dtype).itemsize
    out_itemsize = jnp.dtype(out_dtype).itemsize

    # --- generation-aware VMEM budget -------------------------------------
    vmem_cap = max(_vmem_capacity_bytes(), 32 << 20)
    likely_two_cores = vmem_cap <= (64 << 20)          # v7x-like: 64 MiB/TC, 2 TCs
    cap_frac = 0.62 if likely_two_cores else 0.75      # ~40 MiB v7x, ~96 MiB v5e/v6e
    budget = int(cap_frac * vmem_cap)
    headroom = 8 << 20
    select_budget = max(budget - headroom, 8 << 20)

    def need(tb_, tn_):
        return (2 * tb_ * input_dim * x_itemsize       # x tiles (double-buffered)
                + 2 * K * tn_ * 2                      # bf16 coeff tiles (double-buffered)
                + 2 * tb_ * tn_ * out_itemsize         # output tiles (double-buffered)
                + 2 * tb_ * K * 2                      # h_all scratch + live bf16 chunks
                + 6 * tb_ * input_dim * 4              # f32 tanh / recurrence carries
                + tb_ * tn_ * 4)                       # f32 matmul result pre-cast

    # tn must divide o_pad and be a multiple of 128; prefer tn == o_pad so the
    # coefficient slab is resident once and nothing is recomputed per j.
    m = o_pad // 128
    tn_candidates = sorted({128 * d for d in range(1, m + 1) if m % d == 0},
                           reverse=True)

    tb_candidates = []
    t = max(8, min(_round_up(block_b, 8), _round_up(B, 8)))
    while True:
        if t not in tb_candidates:
            tb_candidates.append(t)
        if t <= 8:
            break
        t = max(8, _round_up(t // 2, 8))

    def pick(tb_floor):
        for tn_ in tn_candidates:
            for tb_ in tb_candidates:
                if tb_ < tb_floor:
                    continue
                if need(tb_, tn_) <= select_budget:
                    return tb_, tn_
        return None

    choice = pick(min(512, _round_up(B, 8)))   # prefer a decent batch tile first
    if choice is None:
        choice = pick(8)
    if choice is None:
        choice = (8, 128)                      # last-resort tiny tile
    tb, tn = choice

    nj = o_pad // tn
    Bp = _round_up(B, tb)
    nb = Bp // tb

    # Only on 2-TC chips, and only if the grid would otherwise be a single
    # program, split the batch so megacore has work for both cores.
    if likely_two_cores and nb * nj < 2 and B >= 16:
        tb = max(8, _round_up((B + 1) // 2, 8))
        Bp = _round_up(B, tb)
        nb = Bp // tb

    if Bp != B:
        # Zero-padded rows still produce nonzero outputs (H_0 == 1 term); they
        # are sliced off below -- do not remove the [:B] slice.
        x2 = jnp.pad(x2, ((0, Bp - B), (0, 0)))

    need_now = need(tb, tn)
    vmem_limit = int(min(budget, max(1.5 * need_now + headroom, 16 << 20)))
    vmem_limit = int(max(vmem_limit, min(need_now + (4 << 20), vmem_cap)))

    out = pl.pallas_call(
        _hermite_kan_kernel(degree, input_dim),
        out_shape=jax.ShapeDtypeStruct((Bp, o_pad), out_dtype),
        grid_spec=pltpu.PrefetchScalarGridSpec(
            num_scalar_prefetch=0,
            grid=(nb, nj),
            in_specs=[
                pl.BlockSpec((tb, input_dim), lambda b, j: (b, 0)),
                pl.BlockSpec((K, tn), lambda b, j: (0, j)),
            ],
            out_specs=pl.BlockSpec((tb, tn), lambda b, j: (b, j)),
            scratch_shapes=[pltpu.VMEM((tb, K), jnp.bfloat16)],
        ),
        compiler_params=pltpu.CompilerParams(
            # j must be 'arbitrary' so megacore never starts a core at j != 0
            # (the Hermite scratch is filled only at j == 0).
            dimension_semantics=("parallel", "arbitrary"),
            vmem_limit_bytes=vmem_limit),
    )(x2, c2)

    return out[:B, :output_dim]


def _reference(x, coeffs):
    """Pure-JAX f32 reference matching the PyTorch forward."""
    input_dim, output_dim, dp1 = coeffs.shape
    degree = dp1 - 1
    xr = jnp.reshape(x, (-1, input_dim)).astype(jnp.float32)
    t = jnp.tanh(xr)
    hs = [jnp.ones_like(t)]
    if degree > 0:
        hs.append(2.0 * t)
    for d in range(2, degree + 1):
        hs.append(2.0 * t * hs[d - 1] - 2.0 * (d - 1) * hs[d - 2])
    hermite = jnp.stack(hs, axis=-1)  # (B, I, D+1)
    return jnp.einsum('bid,iod->bo', hermite, coeffs.astype(jnp.float32))


if __name__ == "__main__":
    key = jax.random.PRNGKey(0)
    k_x, k_c = jax.random.split(key)

    # Small NCHW-ish input; trailing dim == input_dim (flattened to (128, 16)).
    input_dim, output_dim, degree = 16, 32, 3
    x = jax.random.normal(k_x, (2, 4, 16, input_dim), dtype=jnp.float32)

    # Deterministic init matching nn.init.normal_(mean=0, std=1/(I*(deg+1))).
    std = 1.0 / (input_dim * (degree + 1))
    hermite_coeffs = std * jax.random.normal(
        k_c, (input_dim, output_dim, degree + 1), dtype=jnp.float32)

    # Coefficient prep hoisted out of the call (would sit outside a step loop).
    c_prep = prepare_hermite_coeffs(hermite_coeffs)

    y = hermite_kan_forward(x, hermite_coeffs, prepared_coeffs=c_prep)
    y = jax.block_until_ready(y)

    y_ref = _reference(x, hermite_coeffs)
    assert y.shape == (2 * 4 * 16, output_dim), y.shape
    # bf16 MXU inputs (f32 accumulate) -> tolerance loosened vs pure-f32 ref.
    err = float(jnp.max(jnp.abs(y.astype(jnp.float32) - y_ref)))
    assert jnp.allclose(y.astype(jnp.float32), y_ref, atol=2e-2, rtol=2e-2), err

    print("KERNEL_OK")
</pallas_src>

<mosaic_0001>
module attributes {stable_mosaic.version = 11 : i64} {
  func.func @kernel(%arg0: i32, %arg1: i32, %arg2: memref<64x16xf32, #tpu.memory_space<vmem>>, %arg3: memref<64x128xbf16, #tpu.memory_space<vmem>>, %arg4: memref<64x128xf32, #tpu.memory_space<vmem>>, %arg5: memref<64x64xbf16, #tpu.memory_space<vmem>>) attributes {dimension_semantics = [#tpu.dimension_semantics<parallel>, #tpu.dimension_semantics<arbitrary>], iteration_bounds = array<i64: 2, 1>, scalar_prefetch = 0 : i64, scratch_operands = 1 : i64, tpu.core_type = #tpu.core_type<tc>, window_params = [{transform_indices = @transform_0, window_bounds = array<i64: 64, 16>}, {transform_indices = @transform_1, window_bounds = array<i64: 64, 128>}, {transform_indices = @transform_2, window_bounds = array<i64: 64, 128>}]} {
    %c0_i32 = arith.constant 0 : i32
    %0 = arith.cmpi eq, %arg1, %c0_i32 : i32
    %1 = arith.extui %0 : i1 to i32
    %c0_i32_0 = arith.constant 0 : i32
    %2 = arith.cmpi ne, %1, %c0_i32_0 : i32
    scf.if %2 {
      %c0_6 = arith.constant 0 : index
      %c0_7 = arith.constant 0 : index
      %7 = vector.load %arg2[%c0_6, %c0_7] : memref<64x16xf32, #tpu.memory_space<vmem>>, vector<64x16xf32>
      %8 = math.tanh %7 : vector<64x16xf32>
      %cst_8 = arith.constant 2.000000e+00 : f32
      %9 = vector.broadcast %cst_8 : f32 to vector<64x16xf32>
      %10 = arith.mulf %9, %8 : vector<64x16xf32>
      %cst_9 = arith.constant 1.000000e+00 : f32
      %11 = vector.broadcast %cst_9 : f32 to vector<64x16xf32>
      %12 = arith.truncf %11 : vector<64x16xf32> to vector<64x16xbf16>
      %13 = arith.truncf %10 : vector<64x16xf32> to vector<64x16xbf16>
      %14 = arith.mulf %10, %10 : vector<64x16xf32>
      %cst_10 = arith.constant 2.000000e+00 : f32
      %15 = vector.broadcast %cst_10 : f32 to vector<64x16xf32>
      %16 = arith.mulf %15, %11 : vector<64x16xf32>
      %17 = arith.subf %14, %16 : vector<64x16xf32>
      %18 = arith.truncf %17 : vector<64x16xf32> to vector<64x16xbf16>
      %19 = arith.mulf %10, %17 : vector<64x16xf32>
      %cst_11 = arith.constant 4.000000e+00 : f32
      %20 = vector.broadcast %cst_11 : f32 to vector<64x16xf32>
      %21 = arith.mulf %20, %10 : vector<64x16xf32>
      %22 = arith.subf %19, %21 : vector<64x16xf32>
      %23 = arith.truncf %22 : vector<64x16xf32> to vector<64x16xbf16>
      %24 = tpu.concatenate %12, %13, %18, %23 in 1 : vector<64x16xbf16>, vector<64x16xbf16>, vector<64x16xbf16>, vector<64x16xbf16> -> vector<64x64xbf16>
      %c0_12 = arith.constant 0 : index
      %c0_13 = arith.constant 0 : index
      %25 = vector.load %arg5[%c0_12, %c0_13] : memref<64x64xbf16, #tpu.memory_space<vmem>>, vector<64x64xbf16>
      tpu.vector_store %arg5[%c0_12, %c0_13], %24 {strides = array<i32>} : memref<64x64xbf16, #tpu.memory_space<vmem>>, vector<64x64xbf16>,
    } else {
    }
    %c0 = arith.constant 0 : index
    %c0_1 = arith.constant 0 : index
    %3 = vector.load %arg5[%c0, %c0_1] : memref<64x64xbf16, #tpu.memory_space<vmem>>, vector<64x64xbf16>
    %c0_2 = arith.constant 0 : index
    %c0_3 = arith.constant 0 : index
    %4 = vector.load %arg3[%c0_2, %c0_3] : memref<64x128xbf16, #tpu.memory_space<vmem>>, vector<64x128xbf16>
    %cst = arith.constant dense<0.000000e+00> : vector<64x128xf32>
    %5 = tpu.matmul %3, %4, %cst {dimension_numbers = #tpu.dot_dimension_numbers<[1], [0], [0], [1], [0, 0, 1, 1], [], []>} : vector<64x64xbf16>, vector<64x128xbf16>, vector<64x128xf32> -> vector<64x128xf32>
    %c0_4 = arith.constant 0 : index
    %c0_5 = arith.constant 0 : index
    %6 = vector.load %arg4[%c0_4, %c0_5] : memref<64x128xf32, #tpu.memory_space<vmem>>, vector<64x128xf32>
    tpu.vector_store %arg4[%c0_4, %c0_5], %5 {strides = array<i32>} : memref<64x128xf32, #tpu.memory_space<vmem>>, vector<64x128xf32>,
    return
  }
  func.func @transform_0(%arg0: i32, %arg1: i32) -> (i32, i32) {
    %c0_i32 = arith.constant 0 : i32
    %c0_i32_0 = arith.constant 0 : i32
    return %arg0, %c0_i32 : i32, i32
  }
  func.func @transform_1(%arg0: i32, %arg1: i32) -> (i32, i32) {
    %c0_i32 = arith.constant 0 : i32
    %c0_i32_0 = arith.constant 0 : i32
    return %c0_i32, %arg1 : i32, i32
  }
  func.func @transform_2(%arg0: i32, %arg1: i32) -> (i32, i32) {
    %c0_i32 = arith.constant 0 : i32
    return %arg0, %arg1 : i32, i32
  }
}

</mosaic_0001>

<llo_original>
// kernel: tpu_custom_call.1
$region0: #{tpu_custom_call.1}
  #allocation0 [shape = 'u32[]', space=smem, size = 0x4, offset = 0x4, fixed_abs, tag = 'smem constant byte address 0x4 - core index']
  #allocation1 [shape = 'u32[144,128]{1,0:T(1,128)}', space=vmem, size = 0x12000, scoped, tag = 'internal scratch']
  #allocation2 [shape = 'bf16[64,64]{1,0:T(8,128)(2,1)}', space=vmem, size = 0x4000, scoped, tag = 'scratch operand']
  %s0 = inlined_call_operand.vmem [shape: f32[128,16], index: 0, kind: input, shape index: {}]
  %s1 = inlined_call_operand.vmem [shape: bf16[64,128], index: 1, kind: input, shape index: {}]
  %s2 = inlined_call_operand.hbm [shape: f32[128,128], index: 2, kind: output, shape index: {}]
  %s3 = sld [smem:[#allocation0]]
  $region45: #{tpu_custom_call.1} parent=0
    _
  %s5 = ssub.s32 1, %s3
  %s6 = scalar_select 0, %s5, %s3
  $region1: #{tpu_custom_call.1} parent=0
    #allocation3 [shape = 'u8[65536]{0}', space=vmem, size = 0x10000, scoped, tag = 'output window, operand 0']
    #allocation4 [shape = 's32[2]{0}', space=sflag, size = 0x8, scoped, tag = 'scoped memory for tpu_custom_call.1']
    %7 = vsyncpa [#allocation4], 0
    %s8 = scalar_lea.sflag [#allocation4], 1
    %9 = vsyncpa %s8, 0
    loop: start=0, step=1, limit=4
    $region2: #{tpu_custom_call.1} parent=1 // loop_pre_header
      _
    $region3: #{tpu_custom_call.1} parent=1 // loop_header
      %s11 = sphi 0, %s15
      %p12 = scmp.ge.s32.totalorder %s11, 4
      %s18 = sphi 0, %s30
      %s19 = sphi 0, %s26
      %s20 = sphi 0, %s18
      %s21 = sphi 0, %s19
      %s22 = sphi 0, %s20
      %s23 = sphi 0, %s21
      %s33 = sphi 0, %s35
      %s36 = sphi 0, %s33
      %s37 = sphi 0, %s36
      %s53 = sphi 0, %s37
      %s59 = sphi 0, %s61
      %s62 = sphi 0, %s59
      %s63 = sphi 0, %s62
      %s79 = sphi 0, %s63
      %s87 = sphi 0, %s89
      %s90 = sphi 0, %s87
      %s91 = sphi 0, %s90
      %s107 = sphi 0, %s91
    $region4: #{tpu_custom_call.1} parent=1 // loop_header_branch
      %14 = sbr.rel (%p12) target = $region8
    $region5: #{tpu_custom_call.1} parent=1 // loop_body
      %s16 = ssub.s32 %s11, 1
      %s17 = ssub.s32 %s11, 2
      %s24 = sadd.s32 1, %s19
      %p25 = scmp.ge.s32.totalorder %s24, 1
      %s26 = scalar_select %p25, 0, %s24
      %s27 = sadd.s32 1, %s18
      %s28 = scalar_select %p25, %s27, %s18
      %p29 = scmp.ge.s32.totalorder %s28, 2
      %s30 = scalar_select %p29, 0, %s28
      %s31 = ssub.s32 %s18, %s30
      %p32 = scmp.eq.s32.totalorder %s31, 0
      %s34 = sadd.s32 %s33, 1
      %s35 = scalar_select %p32, %s33, %s34
      %p38 = pneg %p32
      %p39 = scmp.eq.s32.totalorder %s11, 1
      %p40 = por %p38, %p39
      %p41 = scmp.ne.s32.totalorder %s33, %s36
      %p42 = scmp.eq.s32.totalorder %s11, 0
      %p43 = por %p41, %p42
      %p44 = scmp.ne.s32.totalorder %s33, %s36
      %p45 = scmp.eq.s32.totalorder %s16, 1
      %p46 = por %p44, %p45
      %p47 = scmp.ne.s32.totalorder %s36, %s37
      %p48 = scmp.eq.s32.totalorder %s16, 0
      %p49 = por %p47, %p48
      %p50 = scmp.ne.s32.totalorder %s36, %s37
      %p51 = scmp.eq.s32.totalorder %s17, 1
      %p52 = por %p50, %p51
      %p54 = scmp.ne.s32.totalorder %s37, %s53
      %p55 = scmp.eq.s32.totalorder %s17, 0
      %p56 = por %p54, %p55
      %s57 = ssub.s32 %s19, %s26
      %p58 = scmp.eq.s32.totalorder %s57, 0
      %s60 = sadd.s32 %s59, 1
      %s61 = scalar_select %p58, %s59, %s60
      %p64 = pneg %p58
      %p65 = scmp.eq.s32.totalorder %s11, 1
      %p66 = por %p64, %p65
      %p67 = scmp.ne.s32.totalorder %s59, %s62
      %p68 = scmp.eq.s32.totalorder %s11, 0
      %p69 = por %p67, %p68
      %p70 = scmp.ne.s32.totalorder %s59, %s62
      %p71 = scmp.eq.s32.totalorder %s16, 1
      %p72 = por %p70, %p71
      %p73 = scmp.ne.s32.totalorder %s62, %s63
      %p74 = scmp.eq.s32.totalorder %s16, 0
      %p75 = por %p73, %p74
      %p76 = scmp.ne.s32.totalorder %s62, %s63
      %p77 = scmp.eq.s32.totalorder %s17, 1
      %p78 = por %p76, %p77
      %p80 = scmp.ne.s32.totalorder %s63, %s79
      %p81 = scmp.eq.s32.totalorder %s17, 0
      %p82 = por %p80, %p81
      %s83 = ssub.s32 %s18, %s30
      %s84 = ssub.s32 %s19, %s26
      %s85 = sor.u32 %s83, %s84
      %p86 = scmp.eq.s32.totalorder %s85, 0
      %s88 = sadd.s32 %s87, 1
      %s89 = scalar_select %p86, %s87, %s88
      %p92 = pneg %p86
      %p93 = scmp.eq.s32.totalorder %s11, 1
      %p94 = por %p92, %p93
      %p95 = scmp.ne.s32.totalorder %s87, %s90
      %p96 = scmp.eq.s32.totalorder %s11, 0
      %p97 = por %p95, %p96
      %p98 = scmp.ne.s32.totalorder %s87, %s90
      %p99 = scmp.eq.s32.totalorder %s16, 1
      %p100 = por %p98, %p99
      %p101 = scmp.ne.s32.totalorder %s90, %s91
      %p102 = scmp.eq.s32.totalorder %s16, 0
      %p103 = por %p101, %p102
      %p104 = scmp.ne.s32.totalorder %s90, %s91
      %p105 = scmp.eq.s32.totalorder %s17, 1
      %p106 = por %p104, %p105
      %p108 = scmp.ne.s32.totalorder %s91, %s107
      %p109 = scmp.eq.s32.totalorder %s17, 0
      %p110 = por %p108, %p109
      %p111 = scmp.le.s32.totalorder 1, %s11
      %p112 = scmp.lt.s32.totalorder %s11, 3
      %p113 = pnand %p111, %p112
      %p114 = pneg %p113
      // Predicated region
      $region9: #{tpu_custom_call.1} parent=5 // pred_check
        _
      $region10: #{tpu_custom_call.1} parent=5 // pred_check_branch
        %116 = sbr.rel (%p113) target = $region12
      $region11: #{tpu_custom_call.1} parent=5 // pred_region
        %s117 = ssub.s32 %s11, 1
        // Predicated region
        $region13: #{tpu_custom_call.1} parent=11 // pred_check
          %p118 = pneg %p75
        $region14: #{tpu_custom_call.1} parent=11 // pred_check_branch
          %120 = sbr.rel (%p118) target = $region16
        $region15: #{tpu_custom_call.1} parent=11 // pred_region
          %p121 = scmp.lt.s32.totalorder %s21, 0
          %s122 = scalar_select %p121, %s21, 0
          %s123 = smul.addr %s122, 4
          %s124 = scalar_lea.vmem %s1, %s123
        $region16: #{tpu_custom_call.1} parent=11 // pred_fallthru
          _
      $region12: #{tpu_custom_call.1} parent=5 // pred_fallthru
        _
      %p125 = scmp.lt.s32.totalorder %s11, 2
      // Predicated region
      $region17: #{tpu_custom_call.1} parent=5 // pred_check
        %p126 = pneg %p125
      $region18: #{tpu_custom_call.1} parent=5 // pred_check_branch
        %128 = sbr.rel (%p126) target = $region20
      $region19: #{tpu_custom_call.1} parent=5 // pred_region
        // Predicated region
        $region21: #{tpu_custom_call.1} parent=19 // pred_check
          %p129 = pneg %p43
        $region22: #{tpu_custom_call.1} parent=19 // pred_check_branch
          %131 = sbr.rel (%p129) target = $region24
        $region23: #{tpu_custom_call.1} parent=19 // pred_region
          %s132 = smul.u32 8, %s18
          %p133 = scmp.lt.s32.totalorder %s132, 15
          %s134 = scalar_select %p133, %s132, 15
          %s135 = smul.addr %s134, 8
          %s136 = scalar_lea.vmem %s0, %s135
          %s137 = smul.u32 8, %s18
        $region24: #{tpu_custom_call.1} parent=19 // pred_fallthru
          _
      $region20: #{tpu_custom_call.1} parent=5 // pred_fallthru
        _
      %p138 = scmp.le.s32.totalorder 1, %s11
      %p139 = scmp.lt.s32.totalorder %s11, 3
      %p140 = pnand %p138, %p139
      %p141 = pneg %p140
      // Predicated region
      $region25: #{tpu_custom_call.1} parent=5 // pred_check
        _
      $region26: #{tpu_custom_call.1} parent=5 // pred_check_branch
        %143 = sbr.rel (%p140) target = $region28
      $region27: #{tpu_custom_call.1} parent=5 // pred_region
        %s144 = ssub.s32 %s11, 1
        %s145 = smul.u32 8, %s20
        %p146 = scmp.lt.s32.totalorder %s145, 15
        %s147 = scalar_select %p146, %s145, 15
        %s148 = smul.addr %s147, 8
        %s149 = scalar_lea.vmem %s0, %s148
        %p150 = pneg %p49
        %p151 = pneg %p46
        %p152 = scmp.lt.s32.totalorder %s21, 0
        %s153 = scalar_select %p152, %s21, 0
        %s154 = smul.addr %s153, 4
        %s155 = scalar_lea.vmem %s1, %s154
        %p156 = pneg %p75
        %p157 = pneg %p72
        %p158 = pneg %p103
        %p159 = pneg %p100
        %s160 = sand.u32 %s90, 1
        %s161 = scalar_lea.sflag [#allocation4], %s160
        %s162 = sand.u32 %s90, 1
        %s163 = smul.addr %s162, 64
        %s164 = scalar_lea.vmem [#allocation3], %s163
        %s165 = smul.u32 8, %s20
        %p166 = scmp.lt.s32.totalorder %s165, 15
        %s167 = scalar_select %p166, %s165, 15
        %s168 = smul.addr %s167, 8
        %s169 = scalar_lea.vmem %s0, %s168
        %s170 = smul.u32 8, %s20
        %p171 = scmp.lt.s32.totalorder %s21, 0
        %s172 = scalar_select %p171, %s21, 0
        %s173 = smul.addr %s172, 4
        %s174 = scalar_lea.vmem %s1, %s173
        %s175 = smul.u32 8, %s20
        %p178 = scmp.eq.s32.totalorder %s21, 0
        // Predicated region
        $region29: #{tpu_custom_call.1} parent=27 // pred_check
          %p179 = pneg %p178
        $region30: #{tpu_custom_call.1} parent=27 // pred_check_branch
          %181 = sbr.rel (%p179) target = $region32
        $region31: #{tpu_custom_call.1} parent=27 // pred_region
          %v182 = vld [vmem:[%s169] sm:$0xff]
          %v183 = vld [vmem:[%s169 + $0x8] sm:$0xff]
          %v184 = vld [vmem:[%s169 + $0x10] sm:$0xff]
          %v185 = vld [vmem:[%s169 + $0x18] sm:$0xff]
          %v186 = vld [vmem:[%s169 + $0x20] sm:$0xff]
          %v187 = vld [vmem:[%s169 + $0x28] sm:$0xff]
          %v188 = vld [vmem:[%s169 + $0x30] sm:$0xff]
          %v189 = vld [vmem:[%s169 + $0x38] sm:$0xff]
          %v190 = vtanh.pop %v182
          %v191 = vtanh.pop %v183
          %v192 = vtanh.pop %v184
          %v193 = vtanh.pop %v185
          %v194 = vtanh.pop %v186
          %v195 = vtanh.pop %v187
          %v196 = vtanh.pop %v188
          %v197 = vtanh.pop %v189
          %v198 = vmul.f32 %v190, 2.0
          %v199 = vmul.f32 %v191, 2.0
          %v200 = vmul.f32 %v192, 2.0
          %v201 = vmul.f32 %v193, 2.0
          %v202 = vmul.f32 %v194, 2.0
          %v203 = vmul.f32 %v195, 2.0
          %v204 = vmul.f32 %v196, 2.0
          %v205 = vmul.f32 %v197, 2.0
          %v206 = vpack.c.bf16 %v199, %v198
          %v207 = vpack.c.bf16 %v201, %v200
          %v208 = vpack.c.bf16 %v203, %v202
          %v209 = vpack.c.bf16 %v205, %v204
          %v210 = vmul.f32 %v198, %v198
          %v211 = vmul.f32 %v199, %v199
          %v212 = vmul.f32 %v200, %v200
          %v213 = vmul.f32 %v201, %v201
          %v214 = vmul.f32 %v202, %v202
          %v215 = vmul.f32 %v203, %v203
          %v216 = vmul.f32 %v204, %v204
          %v217 = vmul.f32 %v205, %v205
          %v218 = vsub.f32 %v210, 2.0
          %v219 = vsub.f32 %v211, 2.0
          %v220 = vsub.f32 %v212, 2.0
          %v221 = vsub.f32 %v213, 2.0
          %v222 = vsub.f32 %v214, 2.0
          %v223 = vsub.f32 %v215, 2.0
          %v224 = vsub.f32 %v216, 2.0
          %v225 = vsub.f32 %v217, 2.0
          %v226 = vpack.c.bf16 %v219, %v218
          %v227 = vpack.c.bf16 %v221, %v220
          %v228 = vpack.c.bf16 %v223, %v222
          %v229 = vpack.c.bf16 %v225, %v224
          %v230 = vmul.f32 %v198, %v218
          %v231 = vmul.f32 %v199, %v219
          %v232 = vmul.f32 %v200, %v220
          %v233 = vmul.f32 %v201, %v221
          %v234 = vmul.f32 %v202, %v222
          %v235 = vmul.f32 %v203, %v223
          %v236 = vmul.f32 %v204, %v224
          %v237 = vmul.f32 %v205, %v225
          %v238 = vmul.f32 %v198, 4.0
          %v239 = vmul.f32 %v199, 4.0
          %v240 = vmul.f32 %v200, 4.0
          %v241 = vmul.f32 %v201, 4.0
          %v242 = vmul.f32 %v202, 4.0
          %v243 = vmul.f32 %v203, 4.0
          %v244 = vmul.f32 %v204, 4.0
          %v245 = vmul.f32 %v205, 4.0
          %v246 = vsub.f32 %v230, %v238
          %v247 = vsub.f32 %v231, %v239
          %v248 = vsub.f32 %v232, %v240
          %v249 = vsub.f32 %v233, %v241
          %v250 = vsub.f32 %v234, %v242
          %v251 = vsub.f32 %v235, %v243
          %v252 = vsub.f32 %v236, %v244
          %v253 = vsub.f32 %v237, %v245
          %v254 = vpack.c.bf16 %v247, %v246
          %v255 = vpack.c.bf16 %v249, %v248
          %v256 = vpack.c.bf16 %v251, %v250
          %v257 = vpack.c.bf16 %v253, %v252
          %262 = vrot.lane.b32.xlu0 %v206, 16
          %v263 = vpop.permute.xlu0 %262
          %264 = vrot.lane.b32.xlu0 %v207, 16
          %v265 = vpop.permute.xlu0 %264
          %266 = vrot.lane.b32.xlu0 %v208, 16
          %v267 = vpop.permute.xlu0 %266
          %268 = vrot.lane.b32.xlu0 %v209, 16
          %v269 = vpop.permute.xlu0 %268
          %274 = vrot.lane.b32.xlu0 %v226, 32
          %v275 = vpop.permute.xlu0 %274
          %276 = vrot.lane.b32.xlu0 %v227, 32
          %v277 = vpop.permute.xlu0 %276
          %278 = vrot.lane.b32.xlu0 %v228, 32
          %v279 = vpop.permute.xlu0 %278
          %280 = vrot.lane.b32.xlu0 %v229, 32
          %v281 = vpop.permute.xlu0 %280
          %286 = vrot.lane.b32.xlu0 %v254, 48
          %v287 = vpop.permute.xlu0 %286
          %288 = vrot.lane.b32.xlu0 %v255, 48
          %v289 = vpop.permute.xlu0 %288
          %290 = vrot.lane.b32.xlu0 %v256, 48
          %v291 = vpop.permute.xlu0 %290
          %292 = vrot.lane.b32.xlu0 %v257, 48
          %v293 = vpop.permute.xlu0 %292
          %vm294 = vcmask 130048
          %v297 = vsel %vm294, 1065369472, %v263
          %v299 = vsel %vm294, 1065369472, %v265
          %v301 = vsel %vm294, 1065369472, %v267
          %v303 = vsel %vm294, 1065369472, %v269
          %vm304 = vcmask 261120
          %v306 = vsel %vm304, %v297, %v275
          %v308 = vsel %vm304, %v299, %v277
          %v310 = vsel %vm304, %v301, %v279
          %v312 = vsel %vm304, %v303, %v281
          %vm313 = vcmask 392192
          %v315 = vsel %vm313, %v306, %v287
          %v317 = vsel %vm313, %v308, %v289
          %v319 = vsel %vm313, %v310, %v291
          %v321 = vsel %vm313, %v312, %v293
          %v326 = vunpack.c.l.b16 %v315
          %v327 = vunpack.c.h.b16 %v315
          %v328 = vunpack.c.l.b16 %v317
          %v329 = vunpack.c.h.b16 %v317
          %v330 = vunpack.c.l.b16 %v319
          %v331 = vunpack.c.h.b16 %v319
          %v332 = vunpack.c.l.b16 %v321
          %v333 = vunpack.c.h.b16 %v321
          %v334 = vpack.c.b16 %v326, %v326
          %v335 = vpack.c.b16 %v327, %v327
          %v336 = vpack.c.b16 %v328, %v328
          %v337 = vpack.c.b16 %v329, %v329
          %v338 = vpack.c.b16 %v330, %v330
          %v339 = vpack.c.b16 %v331, %v331
          %v340 = vpack.c.b16 %v332, %v332
          %v341 = vpack.c.b16 %v333, %v333
          %vm350 = vcmask 519168
          %351 = vst.msk [vmem:[#allocation2] sm:$0xf] %vm350, %v334
          %352 = vst.msk [vmem:[#allocation2 + $0x4] sm:$0xf] %vm350, %v335
          %353 = vst.msk [vmem:[#allocation2 + $0x8] sm:$0xf] %vm350, %v336
          %354 = vst.msk [vmem:[#allocation2 + $0xc] sm:$0xf] %vm350, %v337
          %355 = vst.msk [vmem:[#allocation2 + $0x10] sm:$0xf] %vm350, %v338
          %356 = vst.msk [vmem:[#allocation2 + $0x14] sm:$0xf] %vm350, %v339
          %357 = vst.msk [vmem:[#allocation2 + $0x18] sm:$0xf] %vm350, %v340
          %358 = vst.msk [vmem:[#allocation2 + $0x1c] sm:$0xf] %vm350, %v341
        $region32: #{tpu_custom_call.1} parent=27 // pred_fallthru
          _
        %v359 = vld [vmem:[#allocation2] sm:$0xf]
        %v360 = vld [vmem:[#allocation2 + $0x4] sm:$0xf]
        %v361 = vld [vmem:[#allocation2 + $0x8] sm:$0xf]
        %v362 = vld [vmem:[#allocation2 + $0xc] sm:$0xf]
        %v363 = vld [vmem:[#allocation2 + $0x10] sm:$0xf]
        %v364 = vld [vmem:[#allocation2 + $0x14] sm:$0xf]
        %v365 = vld [vmem:[#allocation2 + $0x18] sm:$0xf]
        %v366 = vld [vmem:[#allocation2 + $0x1c] sm:$0xf]
        %v367 = vld [vmem:[%s174] sm:$0xf]
        %v368 = vld [vmem:[%s174 + $0x4] sm:$0xf]
        %v369 = vld [vmem:[%s174 + $0x8] sm:$0xf]
        %v370 = vld [vmem:[%s174 + $0xc] sm:$0xf]
        %v371 = vld [vmem:[%s174 + $0x10] sm:$0xf]
        %v372 = vld [vmem:[%s174 + $0x14] sm:$0xf]
        %v373 = vld [vmem:[%s174 + $0x18] sm:$0xf]
        %v374 = vld [vmem:[%s174 + $0x1c] sm:$0xf]
        %v383 = vunpack.c.l.b16 %v359
        %v384 = vunpack.c.l.b16 %v360
        %v385 = vunpack.c.l.b16 %v361
        %v386 = vunpack.c.l.b16 %v362
        %v387 = vunpack.c.l.b16 %v363
        %v388 = vunpack.c.l.b16 %v364
        %v389 = vunpack.c.l.b16 %v365
        %v390 = vunpack.c.l.b16 %v366
        %v391 = vpack.c.b16 %v384, %v383
        %v392 = vpack.c.b16 %v386, %v385
        %v393 = vpack.c.b16 %v388, %v387
        %v394 = vpack.c.b16 %v390, %v389
        %v403 = vunpack.c.l.b16 %v367
        %v404 = vunpack.c.l.b16 %v368
        %v405 = vunpack.c.l.b16 %v369
        %v406 = vunpack.c.l.b16 %v370
        %v407 = vunpack.c.l.b16 %v371
        %v408 = vunpack.c.l.b16 %v372
        %v409 = vunpack.c.l.b16 %v373
        %v410 = vunpack.c.l.b16 %v374
        %v411 = vpack.c.b16 %v404, %v403
        %v412 = vpack.c.b16 %v406, %v405
        %v413 = vpack.c.b16 %v408, %v407
        %v414 = vpack.c.b16 %v410, %v409
        %vm419 = vcmask 523264
        %v421 = vsel %vm419, %v391, 0
        %v424 = vsel %vm419, %v392, 0
        %v427 = vsel %vm419, %v393, 0
        %v430 = vsel %vm419, %v394, 0
        %432 = vmatprep.subr.bf16.mxu0 0
        %433 = vmatpush1.bf16.msra.mxu0 0
        %434 = vmatprep.subr.bf16.mxu0 0
        %435 = vmatpush1.bf16.msra.mxu0 0
        %436 = vmatprep.subr.bf16.mxu0 0
        %437 = vmatpush1.bf16.msra.mxu0 0
        %438 = vmatprep.subr.bf16.mxu0 0
        %439 = vmatpush1.bf16.msra.mxu0 0
        %440 = vmatprep.subr.bf16.mxu0 0
        %441 = vmatpush1.bf16.msra.mxu0 %v414
        %442 = vmatprep.subr.bf16.mxu0 0
        %443 = vmatpush1.bf16.msra.mxu0 %v413
        %444 = vmatprep.subr.bf16.mxu0 0
        %445 = vmatpush1.bf16.msra.mxu0 %v412
        %446 = vmatprep.subr.bf16.mxu0 0
        %447 = vmatpush1.bf16.msra.mxu0 %v411
        %448 = vmatprep.subr.bf16.mxu0 0
        %449 = vmatpush2.bf16.msra.mxu0 0
        %450 = vmatprep.subr.bf16.mxu0 0
        %451 = vmatpush2.bf16.msra.mxu0 0
        %452 = vmatprep.subr.bf16.mxu0 0
        %453 = vmatpush2.bf16.msra.mxu0 0
        %454 = vmatprep.subr.bf16.mxu0 0
        %455 = vmatpush2.bf16.msra.mxu0 0
        %456 = vmatprep.subr.bf16.mxu0 0
        %457 = vmatpush2.bf16.msra.mxu0 0
        %458 = vmatprep.subr.bf16.mxu0 0
        %459 = vmatpush2.bf16.msra.mxu0 0
        %460 = vmatprep.subr.bf16.mxu0 0
        %461 = vmatpush2.bf16.msra.mxu0 0
        %462 = vmatprep.subr.bf16.mxu0 0
        %463 = vmatpush2.bf16.msra.mxu0 0
        %464 = vmatprep.mubr.bf16.mxu0 0
        %465 = vmatmul.mubr.bf16.gmra.mxu0 %v421
        %v466 = vpop.f32.mrf.mxu0
        %v467 = vadd.f32 0.0, %v466
        %v468 = vpop.f32.mrf.mxu0
        %v469 = vpop.f32.mrf.mxu0
        %v470 = vadd.f32 0.0, %v469
        %v471 = vpop.f32.mrf.mxu0
        %472 = vmatprep.mubr.bf16.mxu0 0
        %473 = vmatmul.mubr.bf16.gmra.mxu0 %v424
        %v474 = vpop.f32.mrf.mxu0
        %v475 = vadd.f32 0.0, %v474
        %v476 = vpop.f32.mrf.mxu0
        %v477 = vpop.f32.mrf.mxu0
        %v478 = vadd.f32 0.0, %v477
        %v479 = vpop.f32.mrf.mxu0
        %480 = vmatprep.mubr.bf16.mxu0 0
        %481 = vmatmul.mubr.bf16.gmra.mxu0 %v427
        %v482 = vpop.f32.mrf.mxu0
        %v483 = vadd.f32 0.0, %v482
        %v484 = vpop.f32.mrf.mxu0
        %v485 = vpop.f32.mrf.mxu0
        %v486 = vadd.f32 0.0, %v485
        %v487 = vpop.f32.mrf.mxu0
        %488 = vmatprep.mubr.bf16.mxu0 0
        %489 = vmatmul.mubr.bf16.gmra.mxu0 %v430
        %v490 = vpop.f32.mrf.mxu0
        %v491 = vadd.f32 0.0, %v490
        %v492 = vpop.f32.mrf.mxu0
        %v493 = vpop.f32.mrf.mxu0
        %v494 = vadd.f32 0.0, %v493
        %v495 = vpop.f32.mrf.mxu0
        %496 = vdwg.mxu0
        %497 = vst [vmem:[%s164] sm:$0xff] %v467
        %498 = vst [vmem:[%s164 + $0x8] sm:$0xff] %v470
        %499 = vst [vmem:[%s164 + $0x10] sm:$0xff] %v475
        %500 = vst [vmem:[%s164 + $0x18] sm:$0xff] %v478
        %501 = vst [vmem:[%s164 + $0x20] sm:$0xff] %v483
        %502 = vst [vmem:[%s164 + $0x28] sm:$0xff] %v486
        %503 = vst [vmem:[%s164 + $0x30] sm:$0xff] %v491
        %504 = vst [vmem:[%s164 + $0x38] sm:$0xff] %v494
        %s505 = sand.u32 %s90, 1
        %s506 = scalar_lea.sflag [#allocation4], %s505
        %s507 = sand.u32 %s90, 1
        %s508 = smul.addr %s507, 64
        %s509 = scalar_lea.vmem [#allocation3], %s508
        // Predicated region
        $region33: #{tpu_custom_call.1} parent=27 // pred_check
          %p510 = pneg %p100
        $region34: #{tpu_custom_call.1} parent=27 // pred_check_branch
          %512 = sbr.rel (%p510) target = $region36
        $region35: #{tpu_custom_call.1} parent=27 // pred_region
          %s513 = smul.u32 8, %s20
          %s515 = ssub.s32 1024, 1024
          %516 = vsyncadd %s506, %s515
          %s517 = sadd.s32 %s21, %s513
          %s518 = smul.addr %s517, 128
          %s519 = scalar_lea.hbm %s2, %s518
          %s520 = sshll.u32 %s509, 4
          %s521 = int_to_ptr.vmem [resolvable:$true] %s520
          %526 = dma.vmem_to_hbm [thread:$0]  %s521, 1024, %s519, %s506, 128, 128, 8
        $region36: #{tpu_custom_call.1} parent=27 // pred_fallthru
          _
      $region28: #{tpu_custom_call.1} parent=5 // pred_fallthru
        _
      %p527 = scmp.le.s32.totalorder 2, %s11
      // Predicated region
      $region37: #{tpu_custom_call.1} parent=5 // pred_check
        %p528 = pneg %p527
      $region38: #{tpu_custom_call.1} parent=5 // pred_check_branch
        %530 = sbr.rel (%p528) target = $region40
      $region39: #{tpu_custom_call.1} parent=5 // pred_region
        %s531 = ssub.s32 %s11, 2
        // Predicated region
        $region41: #{tpu_custom_call.1} parent=39 // pred_check
          %p532 = pneg %p106
        $region42: #{tpu_custom_call.1} parent=39 // pred_check_branch
          %534 = sbr.rel (%p532) target = $region44
        $region43: #{tpu_custom_call.1} parent=39 // pred_region
          %s535 = sand.u32 %s91, 1
          %s536 = scalar_lea.sflag [#allocation4], %s535
          %s537 = sand.u32 %s91, 1
          %s538 = smul.addr %s537, 64
          %s539 = scalar_lea.vmem [#allocation3], %s538
          %540 = dma.done %s536, 1024
        $region44: #{tpu_custom_call.1} parent=39 // pred_fallthru
          _
      $region40: #{tpu_custom_call.1} parent=5 // pred_fallthru
        _
    $region6: #{tpu_custom_call.1} parent=1 // loop_footer
      %s15 = sadd.s32 1, %s11
    $region7: #{tpu_custom_call.1} parent=1 // loop_footer_branch
      %10 = sbr.rel target = $region3
    $region8: #{tpu_custom_call.1} parent=1 // loop_exit
      _
    %541 = vsyncpa [#allocation4], 1
    %s542 = scalar_lea.sflag [#allocation4], 1
    %543 = vsyncpa %s542, 1

</llo_original>
